<compile_context>
chip_gen: v5e
topology: v5e:2x2
jax: 0.10.0
libtpu: 0.0.40
codegen_flags: <defaults>
</compile_context>

<pallas_src>
import jax
import jax.numpy as jnp
from jax import lax
from jax.experimental import pallas as pl
from jax.experimental.pallas import tpu as pltpu
import numpy as np

H = W = 8                    # spatial size
C0, C1, C2 = 1, 8, 4         # channels
K1, K2 = 5, 3                # conv kernel sizes
POOL = 2
HQ, WQ = H // POOL, W // POOL
FEAT = HQ * WQ * C2          # 64 pooled features (NCHW flatten order)
NWIN = POOL * POOL           # 4 corners of each 2x2 pooling window
NPIX = H * W                 # 64 input pixels per image
KAUG = 72                    # pixels + ones-row, padded up to a multiple of 8
NCLS = 10
BT = 512                     # images per grid step (batch on the lane axis)

_DN = ("NCHW", "OIHW", "NCHW")


def simple_cnn_kernel(x_ref, m_ref, wfc_ref, bfc_ref, out_ref):
    # x_ref  : (1, KAUG, BT)   pixels (+ones row) on sublanes, batch on lanes
    # m_ref  : (NWIN*FEAT, KAUG) folded conv1∘conv2 operator (+bias column)
    # wfc_ref: (NCLS, FEAT),  bfc_ref: (NCLS, BT)
    y = jnp.dot(m_ref[...], x_ref[0],
                preferred_element_type=jnp.float32)                     # (256, BT)
    # MaxPool2d(2): rows of y are ordered (window corner k, NCHW feature f),
    # so pooling is an elementwise max of four 64-row slabs.
    feat = jnp.maximum(
        jnp.maximum(y[0 * FEAT:1 * FEAT], y[1 * FEAT:2 * FEAT]),
        jnp.maximum(y[2 * FEAT:3 * FEAT], y[3 * FEAT:4 * FEAT]))        # (64, BT)
    logits = jnp.dot(wfc_ref[...], feat,
                     preferred_element_type=jnp.float32) + bfc_ref[...]  # (10, BT)
    mx = jnp.max(logits, axis=0, keepdims=True)
    e = jnp.exp(logits - mx)
    s = jnp.sum(e, axis=0, keepdims=True)
    out_ref[0] = e / s        # exact divide for parity with the f32 reference


def _fold_conv_stack(params):
    """Fold Conv2d(1->8,5x5,'same') ∘ Conv2d(8->4,3x3,'same') into one affine
    operator M_aug:(256, KAUG).  Exact (the two convs are linear); columns
    0..63 act on the flattened 8x8 image, column 64 multiplies a constant 1
    (carries both biases incl. conv2's zero-padding of the biased conv1 out)."""
    w1 = params["w1"].astype(jnp.float32)
    b1 = params["b1"].astype(jnp.float32)
    w2 = params["w2"].astype(jnp.float32)
    b2 = params["b2"].astype(jnp.float32)

    # Linear part: push the 64 pixel-basis images through both convs (no bias).
    basis = jnp.eye(NPIX, dtype=jnp.float32).reshape(NPIX, C0, H, W)
    lin = lax.conv_general_dilated(basis, w1, (1, 1), "SAME", dimension_numbers=_DN)
    lin = lax.conv_general_dilated(lin, w2, (1, 1), "SAME", dimension_numbers=_DN)
    a = jnp.transpose(lin, (1, 2, 3, 0))                      # (C2, H, W, NPIX)

    # Affine part: the conv stack applied to a zero image.
    zero = jnp.zeros((1, C0, H, W), jnp.float32)
    t = lax.conv_general_dilated(zero, w1, (1, 1), "SAME", dimension_numbers=_DN)
    t = t + b1[None, :, None, None]
    t = lax.conv_general_dilated(t, w2, (1, 1), "SAME", dimension_numbers=_DN)
    cfull = (t + b2[None, :, None, None])[0]                  # (C2, H, W)

    # Reorder rows to ((dy,dx) pool corner ; (co,p,q) NCHW-flatten feature).
    a = a.reshape(C2, HQ, POOL, WQ, POOL, NPIX)
    a = jnp.transpose(a, (2, 4, 0, 1, 3, 5)).reshape(NWIN * FEAT, NPIX)
    cvec = jnp.transpose(cfull.reshape(C2, HQ, POOL, WQ, POOL),
                         (2, 4, 0, 1, 3)).reshape(NWIN * FEAT)

    m_aug = jnp.zeros((NWIN * FEAT, KAUG), jnp.float32)
    m_aug = m_aug.at[:, :NPIX].set(a).at[:, NPIX].set(cvec)   # bias -> ones-row column
    return m_aug


def simple_cnn_forward(x_nchw, params):
    """x_nchw: (B, 1, 8, 8) float32 -> (B, 10) softmax probs (PyTorch semantics)."""
    B = x_nchw.shape[0]
    nsteps = -(-B // BT)
    Bp = nsteps * BT

    m_aug = _fold_conv_stack(params)                           # (256, 72), batch-independent
    wfc = params["wfc"].astype(jnp.float32)                    # (10, 64), NCHW-flatten cols
    bfc_b = jnp.broadcast_to(params["bfc"].astype(jnp.float32)[:, None], (NCLS, BT))

    # --- layout plumbing: images on lanes, pixels (+ ones row) on sublanes ---
    xf = x_nchw.reshape(B, NPIX).astype(jnp.float32)
    xf = jnp.pad(xf, ((0, Bp - B), (0, 0)))
    xa = jnp.zeros((Bp, KAUG), jnp.float32).at[:, :NPIX].set(xf).at[:, NPIX].set(1.0)
    x_glue = jnp.transpose(xa.reshape(nsteps, BT, KAUG), (0, 2, 1))   # (nsteps, 72, BT)

    out = pl.pallas_call(
        simple_cnn_kernel,
        out_shape=jax.ShapeDtypeStruct((nsteps, NCLS, BT), jnp.float32),
        grid_spec=pltpu.PrefetchScalarGridSpec(
            num_scalar_prefetch=0,
            grid=(nsteps,),
            in_specs=[
                pl.BlockSpec((1, KAUG, BT), lambda s: (s, 0, 0)),      # image tile
                pl.BlockSpec((NWIN * FEAT, KAUG), lambda s: (0, 0)),   # folded conv op
                pl.BlockSpec((NCLS, FEAT), lambda s: (0, 0)),          # FC weight
                pl.BlockSpec((NCLS, BT), lambda s: (0, 0)),            # FC bias (bcast)
            ],
            out_specs=pl.BlockSpec((1, NCLS, BT), lambda s: (s, 0, 0)),
        ),
        compiler_params=pltpu.CompilerParams(
            dimension_semantics=("parallel",)),
    )(x_glue, m_aug, wfc, bfc_b)

    probs = jnp.transpose(out, (0, 2, 1)).reshape(Bp, NCLS)    # back to (B, 10)
    return probs[:B]


def reference_forward(x_nchw, params):
    """Pure-JAX reference mirroring the PyTorch module (NCHW)."""
    y = lax.conv_general_dilated(x_nchw, params["w1"], (1, 1), "SAME",
                                 dimension_numbers=_DN) + params["b1"][None, :, None, None]
    y = lax.conv_general_dilated(y, params["w2"], (1, 1), "SAME",
                                 dimension_numbers=_DN) + params["b2"][None, :, None, None]
    B, C, Hh, Ww = y.shape
    y = y.reshape(B, C, Hh // 2, 2, Ww // 2, 2).max(axis=(3, 5))     # MaxPool2d(2)
    y = y.reshape(B, -1)                                             # Flatten (NCHW order)
    logits = y @ params["wfc"].T + params["bfc"]
    return jax.nn.softmax(logits, axis=1)


if __name__ == "__main__":
    keys = jax.random.split(jax.random.PRNGKey(0), 7)
    B = 2
    x = jax.random.normal(keys[0], (B, C0, H, W), jnp.float32)       # (2, 1, 8, 8)

    params = {
        "w1": 0.2 * jax.random.normal(keys[1], (C1, C0, K1, K1), jnp.float32),
        "b1": 0.1 * jax.random.normal(keys[2], (C1,), jnp.float32),
        "w2": 0.2 * jax.random.normal(keys[3], (C2, C1, K2, K2), jnp.float32),
        "b2": 0.1 * jax.random.normal(keys[4], (C2,), jnp.float32),
        "wfc": 0.2 * jax.random.normal(keys[5], (NCLS, FEAT), jnp.float32),
        "bfc": 0.1 * jax.random.normal(keys[6], (NCLS,), jnp.float32),
    }

    out = jax.jit(simple_cnn_forward)(x, params)
    out = jax.block_until_ready(out)

    ref = jax.block_until_ready(reference_forward(x, params))
    # Slightly looser than pure-f32 ULP since the folded operator reassociates
    # the conv sums; still far below any semantically meaningful difference.
    np.testing.assert_allclose(np.asarray(out), np.asarray(ref), rtol=2e-4, atol=2e-5)
    assert out.shape == (B, NCLS)

    print("KERNEL_OK")
</pallas_src>

<mosaic_0001>
module attributes {stable_mosaic.version = 11 : i64} {
  func.func @simple_cnn_kernel(%arg0: i32, %arg1: memref<1x72x512xf32, #tpu.memory_space<vmem>>, %arg2: memref<256x72xf32, #tpu.memory_space<vmem>>, %arg3: memref<10x64xf32, #tpu.memory_space<vmem>>, %arg4: memref<10x512xf32, #tpu.memory_space<vmem>>, %arg5: memref<1x10x512xf32, #tpu.memory_space<vmem>>) attributes {dimension_semantics = [#tpu.dimension_semantics<parallel>], iteration_bounds = array<i64: 1>, scalar_prefetch = 0 : i64, scratch_operands = 0 : i64, tpu.core_type = #tpu.core_type<tc>, window_params = [{transform_indices = @transform_0, window_bounds = array<i64: 1, 72, 512>}, {pipeline_mode = #tpu.pipeline_mode<synchronous>, transform_indices = @transform_1, window_bounds = array<i64: 256, 72>}, {pipeline_mode = #tpu.pipeline_mode<synchronous>, transform_indices = @transform_2, window_bounds = array<i64: 10, 64>}, {pipeline_mode = #tpu.pipeline_mode<synchronous>, transform_indices = @transform_3, window_bounds = array<i64: 10, 512>}, {transform_indices = @transform_4, window_bounds = array<i64: 1, 10, 512>}]} {
    %c0 = arith.constant 0 : index
    %c0_0 = arith.constant 0 : index
    %0 = vector.load %arg2[%c0, %c0_0] : memref<256x72xf32, #tpu.memory_space<vmem>>, vector<256x72xf32>
    %c0_1 = arith.constant 0 : index
    %c0_2 = arith.constant 0 : index
    %c0_3 = arith.constant 0 : index
    %1 = vector.load %arg1[%c0_1, %c0_2, %c0_3] : memref<1x72x512xf32, #tpu.memory_space<vmem>>, vector<1x72x512xf32>
    %2 = vector.shape_cast %1 : vector<1x72x512xf32> to vector<72x512xf32>
    %cst = arith.constant dense<0.000000e+00> : vector<256x512xf32>
    %3 = tpu.matmul %0, %2, %cst {dimension_numbers = #tpu.dot_dimension_numbers<[1], [0], [0], [1], [0, 0, 1, 1], [], []>} : vector<256x72xf32>, vector<72x512xf32>, vector<256x512xf32> -> vector<256x512xf32>
    %4 = vector.extract_strided_slice %3 {offsets = [0, 0], sizes = [64, 512], strides = [1, 1]} : vector<256x512xf32> to vector<64x512xf32>
    %5 = vector.extract_strided_slice %3 {offsets = [64, 0], sizes = [64, 512], strides = [1, 1]} : vector<256x512xf32> to vector<64x512xf32>
    %6 = arith.maximumf %4, %5 : vector<64x512xf32>
    %7 = vector.extract_strided_slice %3 {offsets = [128, 0], sizes = [64, 512], strides = [1, 1]} : vector<256x512xf32> to vector<64x512xf32>
    %8 = vector.extract_strided_slice %3 {offsets = [192, 0], sizes = [64, 512], strides = [1, 1]} : vector<256x512xf32> to vector<64x512xf32>
    %9 = arith.maximumf %7, %8 : vector<64x512xf32>
    %10 = arith.maximumf %6, %9 : vector<64x512xf32>
    %c0_4 = arith.constant 0 : index
    %c0_5 = arith.constant 0 : index
    %11 = vector.load %arg3[%c0_4, %c0_5] : memref<10x64xf32, #tpu.memory_space<vmem>>, vector<10x64xf32>
    %cst_6 = arith.constant dense<0.000000e+00> : vector<10x512xf32>
    %12 = tpu.matmul %11, %10, %cst_6 {dimension_numbers = #tpu.dot_dimension_numbers<[1], [0], [0], [1], [0, 0, 1, 1], [], []>} : vector<10x64xf32>, vector<64x512xf32>, vector<10x512xf32> -> vector<10x512xf32>
    %c0_7 = arith.constant 0 : index
    %c0_8 = arith.constant 0 : index
    %13 = vector.load %arg4[%c0_7, %c0_8] : memref<10x512xf32, #tpu.memory_space<vmem>>, vector<10x512xf32>
    %14 = arith.addf %12, %13 : vector<10x512xf32>
    %cst_9 = arith.constant dense<0xFF800000> : vector<512xf32>
    %15 = vector.multi_reduction <maximumf>, %14, %cst_9 [0] : vector<10x512xf32> to vector<512xf32>
    %16 = vector.shape_cast %15 : vector<512xf32> to vector<1x512xf32>
    %17 = vector.broadcast %16 : vector<1x512xf32> to vector<10x512xf32>
    %18 = arith.subf %14, %17 : vector<10x512xf32>
    %19 = math.exp %18 : vector<10x512xf32>
    %cst_10 = arith.constant dense<0.000000e+00> : vector<512xf32>
    %20 = vector.multi_reduction <add>, %19, %cst_10 [0] : vector<10x512xf32> to vector<512xf32>
    %21 = vector.shape_cast %20 : vector<512xf32> to vector<1x512xf32>
    %22 = vector.broadcast %21 : vector<1x512xf32> to vector<10x512xf32>
    %23 = arith.divf %19, %22 : vector<10x512xf32>
    %c0_11 = arith.constant 0 : index
    %c0_12 = arith.constant 0 : index
    %c0_13 = arith.constant 0 : index
    %24 = vector.load %arg5[%c0_11, %c0_12, %c0_13] : memref<1x10x512xf32, #tpu.memory_space<vmem>>, vector<1x10x512xf32>
    %25 = vector.shape_cast %24 : vector<1x10x512xf32> to vector<10x512xf32>
    %26 = vector.shape_cast %23 : vector<10x512xf32> to vector<1x10x512xf32>
    tpu.vector_store %arg5[%c0_11, %c0_12, %c0_13], %26 {strides = array<i32>} : memref<1x10x512xf32, #tpu.memory_space<vmem>>, vector<1x10x512xf32>,
    return
  }
  func.func @transform_0(%arg0: i32) -> (i32, i32, i32) {
    %c0_i32 = arith.constant 0 : i32
    %c0_i32_0 = arith.constant 0 : i32
    %c0_i32_1 = arith.constant 0 : i32
    return %arg0, %c0_i32, %c0_i32_0 : i32, i32, i32
  }
  func.func @transform_1(%arg0: i32) -> (i32, i32) {
    %c0_i32 = arith.constant 0 : i32
    %c0_i32_0 = arith.constant 0 : i32
    %c0_i32_1 = arith.constant 0 : i32
    return %c0_i32, %c0_i32_0 : i32, i32
  }
  func.func @transform_2(%arg0: i32) -> (i32, i32) {
    %c0_i32 = arith.constant 0 : i32
    %c0_i32_0 = arith.constant 0 : i32
    %c0_i32_1 = arith.constant 0 : i32
    return %c0_i32, %c0_i32_0 : i32, i32
  }
  func.func @transform_3(%arg0: i32) -> (i32, i32) {
    %c0_i32 = arith.constant 0 : i32
    %c0_i32_0 = arith.constant 0 : i32
    %c0_i32_1 = arith.constant 0 : i32
    return %c0_i32, %c0_i32_0 : i32, i32
  }
  func.func @transform_4(%arg0: i32) -> (i32, i32, i32) {
    %c0_i32 = arith.constant 0 : i32
    %c0_i32_0 = arith.constant 0 : i32
    %c0_i32_1 = arith.constant 0 : i32
    return %arg0, %c0_i32, %c0_i32_0 : i32, i32, i32
  }
}

</mosaic_0001>

<llo_original>
// kernel: simple_cnn_forward.1
$region0: #{simple_cnn_forward.1}
  #allocation0 [shape = 'u32[]', space=smem, size = 0x4, offset = 0x4, fixed_abs, tag = 'smem constant byte address 0x4 - core index']
  #allocation1 [shape = 'u32[72,128]{1,0:T(1,128)}', space=vmem, size = 0x9000, scoped, tag = 'internal scratch']
  %s0 = inlined_call_operand.vmem [shape: f32[1,72,512], index: 0, kind: input, shape index: {}]
  %s1 = inlined_call_operand.vmem [shape: f32[256,72], index: 1, kind: input, shape index: {}]
  %s2 = inlined_call_operand.vmem [shape: f32[10,64], index: 2, kind: input, shape index: {}]
  %s3 = inlined_call_operand.vmem [shape: f32[10,512], index: 3, kind: input, shape index: {}]
  %s4 = inlined_call_operand.vmem [shape: f32[1,10,512], index: 4, kind: output, shape index: {}]
  %s5 = sld [smem:[#allocation0]]
  $region26: #{simple_cnn_forward.1} parent=0
    _
  %s7 = ssub.s32 1, %s5
  %s8 = scalar_select 0, %s7, %s5
  // Predicated region
  $region2: #{simple_cnn_forward.1} parent=0 // pred_check
    _
  $region3: #{simple_cnn_forward.1} parent=0 // pred_check_branch
    %10 = sbr.rel (0) target = $region5
  $region4: #{simple_cnn_forward.1} parent=0 // pred_region
    _
  $region5: #{simple_cnn_forward.1} parent=0 // pred_fallthru
    _
  // Predicated region
  $region6: #{simple_cnn_forward.1} parent=0 // pred_check
    _
  $region7: #{simple_cnn_forward.1} parent=0 // pred_check_branch
    %12 = sbr.rel (0) target = $region9
  $region8: #{simple_cnn_forward.1} parent=0 // pred_region
    _
  $region9: #{simple_cnn_forward.1} parent=0 // pred_fallthru
    _
  // Predicated region
  $region10: #{simple_cnn_forward.1} parent=0 // pred_check
    _
  $region11: #{simple_cnn_forward.1} parent=0 // pred_check_branch
    %14 = sbr.rel (0) target = $region13
  $region12: #{simple_cnn_forward.1} parent=0 // pred_region
    _
  $region13: #{simple_cnn_forward.1} parent=0 // pred_fallthru
    _
  // Predicated region
  $region14: #{simple_cnn_forward.1} parent=0 // pred_check
    _
  $region15: #{simple_cnn_forward.1} parent=0 // pred_check_branch
    %16 = sbr.rel (0) target = $region17
  $region16: #{simple_cnn_forward.1} parent=0 // pred_region
    _
  $region17: #{simple_cnn_forward.1} parent=0 // pred_fallthru
    _
  %v17 = vld [vmem:[%s1] sm:$0xff]
  %v18 = vld [vmem:[%s1 + $0x8] sm:$0xff]
  %v19 = vld [vmem:[%s1 + $0x10] sm:$0xff]
  %v20 = vld [vmem:[%s1 + $0x18] sm:$0xff]
  %v21 = vld [vmem:[%s1 + $0x20] sm:$0xff]
  %v22 = vld [vmem:[%s1 + $0x28] sm:$0xff]
  %v23 = vld [vmem:[%s1 + $0x30] sm:$0xff]
  %v24 = vld [vmem:[%s1 + $0x38] sm:$0xff]
  %v25 = vld [vmem:[%s1 + $0x40] sm:$0xff]
  %v26 = vld [vmem:[%s1 + $0x48] sm:$0xff]
  %v27 = vld [vmem:[%s1 + $0x50] sm:$0xff]
  %v28 = vld [vmem:[%s1 + $0x58] sm:$0xff]
  %v29 = vld [vmem:[%s1 + $0x60] sm:$0xff]
  %v30 = vld [vmem:[%s1 + $0x68] sm:$0xff]
  %v31 = vld [vmem:[%s1 + $0x70] sm:$0xff]
  %v32 = vld [vmem:[%s1 + $0x78] sm:$0xff]
  %v33 = vld [vmem:[%s1 + $0x80] sm:$0xff]
  %v34 = vld [vmem:[%s1 + $0x88] sm:$0xff]
  %v35 = vld [vmem:[%s1 + $0x90] sm:$0xff]
  %v36 = vld [vmem:[%s1 + $0x98] sm:$0xff]
  %v37 = vld [vmem:[%s1 + $0xa0] sm:$0xff]
  %v38 = vld [vmem:[%s1 + $0xa8] sm:$0xff]
  %v39 = vld [vmem:[%s1 + $0xb0] sm:$0xff]
  %v40 = vld [vmem:[%s1 + $0xb8] sm:$0xff]
  %v41 = vld [vmem:[%s1 + $0xc0] sm:$0xff]
  %v42 = vld [vmem:[%s1 + $0xc8] sm:$0xff]
  %v43 = vld [vmem:[%s1 + $0xd0] sm:$0xff]
  %v44 = vld [vmem:[%s1 + $0xd8] sm:$0xff]
  %v45 = vld [vmem:[%s1 + $0xe0] sm:$0xff]
  %v46 = vld [vmem:[%s1 + $0xe8] sm:$0xff]
  %v47 = vld [vmem:[%s1 + $0xf0] sm:$0xff]
  %v48 = vld [vmem:[%s1 + $0xf8] sm:$0xff]
  %v49 = vld [vmem:[%s0] sm:$0xff]
  %v50 = vld [vmem:[%s0 + $0x8] sm:$0xff]
  %v51 = vld [vmem:[%s0 + $0x10] sm:$0xff]
  %v52 = vld [vmem:[%s0 + $0x18] sm:$0xff]
  %v53 = vld [vmem:[%s0 + $0x20] sm:$0xff]
  %v54 = vld [vmem:[%s0 + $0x28] sm:$0xff]
  %v55 = vld [vmem:[%s0 + $0x30] sm:$0xff]
  %v56 = vld [vmem:[%s0 + $0x38] sm:$0xff]
  %v57 = vld [vmem:[%s0 + $0x40] sm:$0xff]
  %v58 = vld [vmem:[%s0 + $0x48] sm:$0xff]
  %v59 = vld [vmem:[%s0 + $0x50] sm:$0xff]
  %v60 = vld [vmem:[%s0 + $0x58] sm:$0xff]
  %v61 = vld [vmem:[%s0 + $0x60] sm:$0xff]
  %v62 = vld [vmem:[%s0 + $0x68] sm:$0xff]
  %v63 = vld [vmem:[%s0 + $0x70] sm:$0xff]
  %v64 = vld [vmem:[%s0 + $0x78] sm:$0xff]
  %v65 = vld [vmem:[%s0 + $0x80] sm:$0xff]
  %v66 = vld [vmem:[%s0 + $0x88] sm:$0xff]
  %v67 = vld [vmem:[%s0 + $0x90] sm:$0xff]
  %v68 = vld [vmem:[%s0 + $0x98] sm:$0xff]
  %v69 = vld [vmem:[%s0 + $0xa0] sm:$0xff]
  %v70 = vld [vmem:[%s0 + $0xa8] sm:$0xff]
  %v71 = vld [vmem:[%s0 + $0xb0] sm:$0xff]
  %v72 = vld [vmem:[%s0 + $0xb8] sm:$0xff]
  %v73 = vld [vmem:[%s0 + $0xc0] sm:$0xff]
  %v74 = vld [vmem:[%s0 + $0xc8] sm:$0xff]
  %v75 = vld [vmem:[%s0 + $0xd0] sm:$0xff]
  %v76 = vld [vmem:[%s0 + $0xd8] sm:$0xff]
  %v77 = vld [vmem:[%s0 + $0xe0] sm:$0xff]
  %v78 = vld [vmem:[%s0 + $0xe8] sm:$0xff]
  %v79 = vld [vmem:[%s0 + $0xf0] sm:$0xff]
  %v80 = vld [vmem:[%s0 + $0xf8] sm:$0xff]
  %v81 = vld [vmem:[%s0 + $0x100] sm:$0xff]
  %v82 = vld [vmem:[%s0 + $0x108] sm:$0xff]
  %v83 = vld [vmem:[%s0 + $0x110] sm:$0xff]
  %v84 = vld [vmem:[%s0 + $0x118] sm:$0xff]
  %vm85 = vcmask 588800
  %v87 = vsel %vm85, %v17, 0
  %v90 = vsel %vm85, %v18, 0
  %v93 = vsel %vm85, %v19, 0
  %v96 = vsel %vm85, %v20, 0
  %v99 = vsel %vm85, %v21, 0
  %v102 = vsel %vm85, %v22, 0
  %v105 = vsel %vm85, %v23, 0
  %v108 = vsel %vm85, %v24, 0
  %v111 = vsel %vm85, %v25, 0
  %v114 = vsel %vm85, %v26, 0
  %v117 = vsel %vm85, %v27, 0
  %v120 = vsel %vm85, %v28, 0
  %v123 = vsel %vm85, %v29, 0
  %v126 = vsel %vm85, %v30, 0
  %v129 = vsel %vm85, %v31, 0
  %v132 = vsel %vm85, %v32, 0
  %v135 = vsel %vm85, %v33, 0
  %v138 = vsel %vm85, %v34, 0
  %v141 = vsel %vm85, %v35, 0
  %v144 = vsel %vm85, %v36, 0
  %v147 = vsel %vm85, %v37, 0
  %v150 = vsel %vm85, %v38, 0
  %v153 = vsel %vm85, %v39, 0
  %v156 = vsel %vm85, %v40, 0
  %v159 = vsel %vm85, %v41, 0
  %v162 = vsel %vm85, %v42, 0
  %v165 = vsel %vm85, %v43, 0
  %v168 = vsel %vm85, %v44, 0
  %v171 = vsel %vm85, %v45, 0
  %v174 = vsel %vm85, %v46, 0
  %v177 = vsel %vm85, %v47, 0
  %v180 = vsel %vm85, %v48, 0
  %182 = vmatpush.msra.mxu0 0.0
  %183 = vmatpush.msra.mxu0 0.0
  %184 = vmatpush.msra.mxu0 0.0
  %185 = vmatpush.msra.mxu0 0.0
  %186 = vmatpush.msra.mxu0 0.0
  %187 = vmatpush.msra.mxu0 0.0
  %188 = vmatpush.msra.mxu0 0.0
  %189 = vmatpush.msra.mxu0 %v81
  %190 = vmatpush.msra.mxu0 %v77
  %191 = vmatpush.msra.mxu0 %v73
  %192 = vmatpush.msra.mxu0 %v69
  %193 = vmatpush.msra.mxu0 %v65
  %194 = vmatpush.msra.mxu0 %v61
  %195 = vmatpush.msra.mxu0 %v57
  %196 = vmatpush.msra.mxu0 %v53
  %197 = vmatpush.msra.mxu0 %v49
  %198 = vmatmul.f32.gmra.mxu0 %v87
  %v199 = vpop.f32.mrf.mxu0
  %v200 = vadd.f32 0.0, %v199
  %201 = vmatmul.f32.gmra.mxu0 %v90
  %v202 = vpop.f32.mrf.mxu0
  %v203 = vadd.f32 0.0, %v202
  %204 = vmatmul.f32.gmra.mxu0 %v93
  %v205 = vpop.f32.mrf.mxu0
  %v206 = vadd.f32 0.0, %v205
  %207 = vmatmul.f32.gmra.mxu0 %v96
  %v208 = vpop.f32.mrf.mxu0
  %v209 = vadd.f32 0.0, %v208
  %210 = vmatmul.f32.gmra.mxu0 %v99
  %v211 = vpop.f32.mrf.mxu0
  %v212 = vadd.f32 0.0, %v211
  %213 = vmatmul.f32.gmra.mxu0 %v102
  %v214 = vpop.f32.mrf.mxu0
  %v215 = vadd.f32 0.0, %v214
  %216 = vmatmul.f32.gmra.mxu0 %v105
  %v217 = vpop.f32.mrf.mxu0
  %v218 = vadd.f32 0.0, %v217
  %219 = vmatmul.f32.gmra.mxu0 %v108
  %v220 = vpop.f32.mrf.mxu0
  %v221 = vadd.f32 0.0, %v220
  %222 = vmatmul.f32.gmra.mxu0 %v111
  %v223 = vpop.f32.mrf.mxu0
  %v224 = vadd.f32 0.0, %v223
  %225 = vmatmul.f32.gmra.mxu0 %v114
  %v226 = vpop.f32.mrf.mxu0
  %v227 = vadd.f32 0.0, %v226
  %228 = vmatmul.f32.gmra.mxu0 %v117
  %v229 = vpop.f32.mrf.mxu0
  %v230 = vadd.f32 0.0, %v229
  %231 = vmatmul.f32.gmra.mxu0 %v120
  %v232 = vpop.f32.mrf.mxu0
  %v233 = vadd.f32 0.0, %v232
  %234 = vmatmul.f32.gmra.mxu0 %v123
  %v235 = vpop.f32.mrf.mxu0
  %v236 = vadd.f32 0.0, %v235
  %237 = vmatmul.f32.gmra.mxu0 %v126
  %v238 = vpop.f32.mrf.mxu0
  %v239 = vadd.f32 0.0, %v238
  %240 = vmatmul.f32.gmra.mxu0 %v129
  %v241 = vpop.f32.mrf.mxu0
  %v242 = vadd.f32 0.0, %v241
  %243 = vmatmul.f32.gmra.mxu0 %v132
  %v244 = vpop.f32.mrf.mxu0
  %v245 = vadd.f32 0.0, %v244
  %246 = vmatmul.f32.gmra.mxu0 %v135
  %v247 = vpop.f32.mrf.mxu0
  %v248 = vadd.f32 0.0, %v247
  %249 = vmatmul.f32.gmra.mxu0 %v138
  %v250 = vpop.f32.mrf.mxu0
  %v251 = vadd.f32 0.0, %v250
  %252 = vmatmul.f32.gmra.mxu0 %v141
  %v253 = vpop.f32.mrf.mxu0
  %v254 = vadd.f32 0.0, %v253
  %255 = vmatmul.f32.gmra.mxu0 %v144
  %v256 = vpop.f32.mrf.mxu0
  %v257 = vadd.f32 0.0, %v256
  %258 = vmatmul.f32.gmra.mxu0 %v147
  %v259 = vpop.f32.mrf.mxu0
  %v260 = vadd.f32 0.0, %v259
  %261 = vmatmul.f32.gmra.mxu0 %v150
  %v262 = vpop.f32.mrf.mxu0
  %v263 = vadd.f32 0.0, %v262
  %264 = vmatmul.f32.gmra.mxu0 %v153
  %v265 = vpop.f32.mrf.mxu0
  %v266 = vadd.f32 0.0, %v265
  %267 = vmatmul.f32.gmra.mxu0 %v156
  %v268 = vpop.f32.mrf.mxu0
  %v269 = vadd.f32 0.0, %v268
  %270 = vmatmul.f32.gmra.mxu0 %v159
  %v271 = vpop.f32.mrf.mxu0
  %v272 = vadd.f32 0.0, %v271
  %273 = vmatmul.f32.gmra.mxu0 %v162
  %v274 = vpop.f32.mrf.mxu0
  %v275 = vadd.f32 0.0, %v274
  %276 = vmatmul.f32.gmra.mxu0 %v165
  %v277 = vpop.f32.mrf.mxu0
  %v278 = vadd.f32 0.0, %v277
  %279 = vmatmul.f32.gmra.mxu0 %v168
  %v280 = vpop.f32.mrf.mxu0
  %v281 = vadd.f32 0.0, %v280
  %282 = vmatmul.f32.gmra.mxu0 %v171
  %v283 = vpop.f32.mrf.mxu0
  %v284 = vadd.f32 0.0, %v283
  %285 = vmatmul.f32.gmra.mxu0 %v174
  %v286 = vpop.f32.mrf.mxu0
  %v287 = vadd.f32 0.0, %v286
  %288 = vmatmul.f32.gmra.mxu0 %v177
  %v289 = vpop.f32.mrf.mxu0
  %v290 = vadd.f32 0.0, %v289
  %291 = vmatmul.f32.gmra.mxu0 %v180
  %v292 = vpop.f32.mrf.mxu0
  %v293 = vadd.f32 0.0, %v292
  %294 = vdwg.mxu0
  %295 = vmatpush.msra.mxu0 0.0
  %296 = vmatpush.msra.mxu0 0.0
  %297 = vmatpush.msra.mxu0 0.0
  %298 = vmatpush.msra.mxu0 0.0
  %299 = vmatpush.msra.mxu0 0.0
  %300 = vmatpush.msra.mxu0 0.0
  %301 = vmatpush.msra.mxu0 0.0
  %302 = vmatpush.msra.mxu0 %v82
  %303 = vmatpush.msra.mxu0 %v78
  %304 = vmatpush.msra.mxu0 %v74
  %305 = vmatpush.msra.mxu0 %v70
  %306 = vmatpush.msra.mxu0 %v66
  %307 = vmatpush.msra.mxu0 %v62
  %308 = vmatpush.msra.mxu0 %v58
  %309 = vmatpush.msra.mxu0 %v54
  %310 = vmatpush.msra.mxu0 %v50
  %311 = vmatmul.f32.gmra.mxu0 %v87
  %v312 = vpop.f32.mrf.mxu0
  %v313 = vadd.f32 0.0, %v312
  %314 = vmatmul.f32.gmra.mxu0 %v90
  %v315 = vpop.f32.mrf.mxu0
  %v316 = vadd.f32 0.0, %v315
  %317 = vmatmul.f32.gmra.mxu0 %v93
  %v318 = vpop.f32.mrf.mxu0
  %v319 = vadd.f32 0.0, %v318
  %320 = vmatmul.f32.gmra.mxu0 %v96
  %v321 = vpop.f32.mrf.mxu0
  %v322 = vadd.f32 0.0, %v321
  %323 = vmatmul.f32.gmra.mxu0 %v99
  %v324 = vpop.f32.mrf.mxu0
  %v325 = vadd.f32 0.0, %v324
  %326 = vmatmul.f32.gmra.mxu0 %v102
  %v327 = vpop.f32.mrf.mxu0
  %v328 = vadd.f32 0.0, %v327
  %329 = vmatmul.f32.gmra.mxu0 %v105
  %v330 = vpop.f32.mrf.mxu0
  %v331 = vadd.f32 0.0, %v330
  %332 = vmatmul.f32.gmra.mxu0 %v108
  %v333 = vpop.f32.mrf.mxu0
  %v334 = vadd.f32 0.0, %v333
  %335 = vmatmul.f32.gmra.mxu0 %v111
  %v336 = vpop.f32.mrf.mxu0
  %v337 = vadd.f32 0.0, %v336
  %338 = vmatmul.f32.gmra.mxu0 %v114
  %v339 = vpop.f32.mrf.mxu0
  %v340 = vadd.f32 0.0, %v339
  %341 = vmatmul.f32.gmra.mxu0 %v117
  %v342 = vpop.f32.mrf.mxu0
  %v343 = vadd.f32 0.0, %v342
  %344 = vmatmul.f32.gmra.mxu0 %v120
  %v345 = vpop.f32.mrf.mxu0
  %v346 = vadd.f32 0.0, %v345
  %347 = vmatmul.f32.gmra.mxu0 %v123
  %v348 = vpop.f32.mrf.mxu0
  %v349 = vadd.f32 0.0, %v348
  %350 = vmatmul.f32.gmra.mxu0 %v126
  %v351 = vpop.f32.mrf.mxu0
  %v352 = vadd.f32 0.0, %v351
  %353 = vmatmul.f32.gmra.mxu0 %v129
  %v354 = vpop.f32.mrf.mxu0
  %v355 = vadd.f32 0.0, %v354
  %356 = vmatmul.f32.gmra.mxu0 %v132
  %v357 = vpop.f32.mrf.mxu0
  %v358 = vadd.f32 0.0, %v357
  %359 = vmatmul.f32.gmra.mxu0 %v135
  %v360 = vpop.f32.mrf.mxu0
  %v361 = vadd.f32 0.0, %v360
  %362 = vmatmul.f32.gmra.mxu0 %v138
  %v363 = vpop.f32.mrf.mxu0
  %v364 = vadd.f32 0.0, %v363
  %365 = vmatmul.f32.gmra.mxu0 %v141
  %v366 = vpop.f32.mrf.mxu0
  %v367 = vadd.f32 0.0, %v366
  %368 = vmatmul.f32.gmra.mxu0 %v144
  %v369 = vpop.f32.mrf.mxu0
  %v370 = vadd.f32 0.0, %v369
  %371 = vmatmul.f32.gmra.mxu0 %v147
  %v372 = vpop.f32.mrf.mxu0
  %v373 = vadd.f32 0.0, %v372
  %374 = vmatmul.f32.gmra.mxu0 %v150
  %v375 = vpop.f32.mrf.mxu0
  %v376 = vadd.f32 0.0, %v375
  %377 = vmatmul.f32.gmra.mxu0 %v153
  %v378 = vpop.f32.mrf.mxu0
  %v379 = vadd.f32 0.0, %v378
  %380 = vmatmul.f32.gmra.mxu0 %v156
  %v381 = vpop.f32.mrf.mxu0
  %v382 = vadd.f32 0.0, %v381
  %383 = vmatmul.f32.gmra.mxu0 %v159
  %v384 = vpop.f32.mrf.mxu0
  %v385 = vadd.f32 0.0, %v384
  %386 = vmatmul.f32.gmra.mxu0 %v162
  %v387 = vpop.f32.mrf.mxu0
  %v388 = vadd.f32 0.0, %v387
  %389 = vmatmul.f32.gmra.mxu0 %v165
  %v390 = vpop.f32.mrf.mxu0
  %v391 = vadd.f32 0.0, %v390
  %392 = vmatmul.f32.gmra.mxu0 %v168
  %v393 = vpop.f32.mrf.mxu0
  %v394 = vadd.f32 0.0, %v393
  %395 = vmatmul.f32.gmra.mxu0 %v171
  %v396 = vpop.f32.mrf.mxu0
  %v397 = vadd.f32 0.0, %v396
  %398 = vmatmul.f32.gmra.mxu0 %v174
  %v399 = vpop.f32.mrf.mxu0
  %v400 = vadd.f32 0.0, %v399
  %401 = vmatmul.f32.gmra.mxu0 %v177
  %v402 = vpop.f32.mrf.mxu0
  %v403 = vadd.f32 0.0, %v402
  %404 = vmatmul.f32.gmra.mxu0 %v180
  %v405 = vpop.f32.mrf.mxu0
  %v406 = vadd.f32 0.0, %v405
  %407 = vdwg.mxu0
  %408 = vmatpush.msra.mxu0 0.0
  %409 = vmatpush.msra.mxu0 0.0
  %410 = vmatpush.msra.mxu0 0.0
  %411 = vmatpush.msra.mxu0 0.0
  %412 = vmatpush.msra.mxu0 0.0
  %413 = vmatpush.msra.mxu0 0.0
  %414 = vmatpush.msra.mxu0 0.0
  %415 = vmatpush.msra.mxu0 %v83
  %416 = vmatpush.msra.mxu0 %v79
  %417 = vmatpush.msra.mxu0 %v75
  %418 = vmatpush.msra.mxu0 %v71
  %419 = vmatpush.msra.mxu0 %v67
  %420 = vmatpush.msra.mxu0 %v63
  %421 = vmatpush.msra.mxu0 %v59
  %422 = vmatpush.msra.mxu0 %v55
  %423 = vmatpush.msra.mxu0 %v51
  %424 = vmatmul.f32.gmra.mxu0 %v87
  %v425 = vpop.f32.mrf.mxu0
  %v426 = vadd.f32 0.0, %v425
  %427 = vmatmul.f32.gmra.mxu0 %v90
  %v428 = vpop.f32.mrf.mxu0
  %v429 = vadd.f32 0.0, %v428
  %430 = vmatmul.f32.gmra.mxu0 %v93
  %v431 = vpop.f32.mrf.mxu0
  %v432 = vadd.f32 0.0, %v431
  %433 = vmatmul.f32.gmra.mxu0 %v96
  %v434 = vpop.f32.mrf.mxu0
  %v435 = vadd.f32 0.0, %v434
  %436 = vmatmul.f32.gmra.mxu0 %v99
  %v437 = vpop.f32.mrf.mxu0
  %v438 = vadd.f32 0.0, %v437
  %439 = vmatmul.f32.gmra.mxu0 %v102
  %v440 = vpop.f32.mrf.mxu0
  %v441 = vadd.f32 0.0, %v440
  %442 = vmatmul.f32.gmra.mxu0 %v105
  %v443 = vpop.f32.mrf.mxu0
  %v444 = vadd.f32 0.0, %v443
  %445 = vmatmul.f32.gmra.mxu0 %v108
  %v446 = vpop.f32.mrf.mxu0
  %v447 = vadd.f32 0.0, %v446
  %448 = vmatmul.f32.gmra.mxu0 %v111
  %v449 = vpop.f32.mrf.mxu0
  %v450 = vadd.f32 0.0, %v449
  %451 = vmatmul.f32.gmra.mxu0 %v114
  %v452 = vpop.f32.mrf.mxu0
  %v453 = vadd.f32 0.0, %v452
  %454 = vmatmul.f32.gmra.mxu0 %v117
  %v455 = vpop.f32.mrf.mxu0
  %v456 = vadd.f32 0.0, %v455
  %457 = vmatmul.f32.gmra.mxu0 %v120
  %v458 = vpop.f32.mrf.mxu0
  %v459 = vadd.f32 0.0, %v458
  %460 = vmatmul.f32.gmra.mxu0 %v123
  %v461 = vpop.f32.mrf.mxu0
  %v462 = vadd.f32 0.0, %v461
  %463 = vmatmul.f32.gmra.mxu0 %v126
  %v464 = vpop.f32.mrf.mxu0
  %v465 = vadd.f32 0.0, %v464
  %466 = vmatmul.f32.gmra.mxu0 %v129
  %v467 = vpop.f32.mrf.mxu0
  %v468 = vadd.f32 0.0, %v467
  %469 = vmatmul.f32.gmra.mxu0 %v132
  %v470 = vpop.f32.mrf.mxu0
  %v471 = vadd.f32 0.0, %v470
  %472 = vmatmul.f32.gmra.mxu0 %v135
  %v473 = vpop.f32.mrf.mxu0
  %v474 = vadd.f32 0.0, %v473
  %475 = vmatmul.f32.gmra.mxu0 %v138
  %v476 = vpop.f32.mrf.mxu0
  %v477 = vadd.f32 0.0, %v476
  %478 = vmatmul.f32.gmra.mxu0 %v141
  %v479 = vpop.f32.mrf.mxu0
  %v480 = vadd.f32 0.0, %v479
  %481 = vmatmul.f32.gmra.mxu0 %v144
  %v482 = vpop.f32.mrf.mxu0
  %v483 = vadd.f32 0.0, %v482
  %484 = vmatmul.f32.gmra.mxu0 %v147
  %v485 = vpop.f32.mrf.mxu0
  %v486 = vadd.f32 0.0, %v485
  %487 = vmatmul.f32.gmra.mxu0 %v150
  %v488 = vpop.f32.mrf.mxu0
  %v489 = vadd.f32 0.0, %v488
  %490 = vmatmul.f32.gmra.mxu0 %v153
  %v491 = vpop.f32.mrf.mxu0
  %v492 = vadd.f32 0.0, %v491
  %493 = vmatmul.f32.gmra.mxu0 %v156
  %v494 = vpop.f32.mrf.mxu0
  %v495 = vadd.f32 0.0, %v494
  %496 = vmatmul.f32.gmra.mxu0 %v159
  %v497 = vpop.f32.mrf.mxu0
  %v498 = vadd.f32 0.0, %v497
  %499 = vmatmul.f32.gmra.mxu0 %v162
  %v500 = vpop.f32.mrf.mxu0
  %v501 = vadd.f32 0.0, %v500
  %502 = vmatmul.f32.gmra.mxu0 %v165
  %v503 = vpop.f32.mrf.mxu0
  %v504 = vadd.f32 0.0, %v503
  %505 = vmatmul.f32.gmra.mxu0 %v168
  %v506 = vpop.f32.mrf.mxu0
  %v507 = vadd.f32 0.0, %v506
  %508 = vmatmul.f32.gmra.mxu0 %v171
  %v509 = vpop.f32.mrf.mxu0
  %v510 = vadd.f32 0.0, %v509
  %511 = vmatmul.f32.gmra.mxu0 %v174
  %v512 = vpop.f32.mrf.mxu0
  %v513 = vadd.f32 0.0, %v512
  %514 = vmatmul.f32.gmra.mxu0 %v177
  %v515 = vpop.f32.mrf.mxu0
  %v516 = vadd.f32 0.0, %v515
  %517 = vmatmul.f32.gmra.mxu0 %v180
  %v518 = vpop.f32.mrf.mxu0
  %v519 = vadd.f32 0.0, %v518
  %520 = vdwg.mxu0
  %521 = vmatpush.msra.mxu0 0.0
  %522 = vmatpush.msra.mxu0 0.0
  %523 = vmatpush.msra.mxu0 0.0
  %524 = vmatpush.msra.mxu0 0.0
  %525 = vmatpush.msra.mxu0 0.0
  %526 = vmatpush.msra.mxu0 0.0
  %527 = vmatpush.msra.mxu0 0.0
  %528 = vmatpush.msra.mxu0 %v84
  %529 = vmatpush.msra.mxu0 %v80
  %530 = vmatpush.msra.mxu0 %v76
  %531 = vmatpush.msra.mxu0 %v72
  %532 = vmatpush.msra.mxu0 %v68
  %533 = vmatpush.msra.mxu0 %v64
  %534 = vmatpush.msra.mxu0 %v60
  %535 = vmatpush.msra.mxu0 %v56
  %536 = vmatpush.msra.mxu0 %v52
  %537 = vmatmul.f32.gmra.mxu0 %v87
  %v538 = vpop.f32.mrf.mxu0
  %v539 = vadd.f32 0.0, %v538
  %540 = vmatmul.f32.gmra.mxu0 %v90
  %v541 = vpop.f32.mrf.mxu0
  %v542 = vadd.f32 0.0, %v541
  %543 = vmatmul.f32.gmra.mxu0 %v93
  %v544 = vpop.f32.mrf.mxu0
  %v545 = vadd.f32 0.0, %v544
  %546 = vmatmul.f32.gmra.mxu0 %v96
  %v547 = vpop.f32.mrf.mxu0
  %v548 = vadd.f32 0.0, %v547
  %549 = vmatmul.f32.gmra.mxu0 %v99
  %v550 = vpop.f32.mrf.mxu0
  %v551 = vadd.f32 0.0, %v550
  %552 = vmatmul.f32.gmra.mxu0 %v102
  %v553 = vpop.f32.mrf.mxu0
  %v554 = vadd.f32 0.0, %v553
  %555 = vmatmul.f32.gmra.mxu0 %v105
  %v556 = vpop.f32.mrf.mxu0
  %v557 = vadd.f32 0.0, %v556
  %558 = vmatmul.f32.gmra.mxu0 %v108
  %v559 = vpop.f32.mrf.mxu0
  %v560 = vadd.f32 0.0, %v559
  %561 = vmatmul.f32.gmra.mxu0 %v111
  %v562 = vpop.f32.mrf.mxu0
  %v563 = vadd.f32 0.0, %v562
  %564 = vmatmul.f32.gmra.mxu0 %v114
  %v565 = vpop.f32.mrf.mxu0
  %v566 = vadd.f32 0.0, %v565
  %567 = vmatmul.f32.gmra.mxu0 %v117
  %v568 = vpop.f32.mrf.mxu0
  %v569 = vadd.f32 0.0, %v568
  %570 = vmatmul.f32.gmra.mxu0 %v120
  %v571 = vpop.f32.mrf.mxu0
  %v572 = vadd.f32 0.0, %v571
  %573 = vmatmul.f32.gmra.mxu0 %v123
  %v574 = vpop.f32.mrf.mxu0
  %v575 = vadd.f32 0.0, %v574
  %576 = vmatmul.f32.gmra.mxu0 %v126
  %v577 = vpop.f32.mrf.mxu0
  %v578 = vadd.f32 0.0, %v577
  %579 = vmatmul.f32.gmra.mxu0 %v129
  %v580 = vpop.f32.mrf.mxu0
  %v581 = vadd.f32 0.0, %v580
  %582 = vmatmul.f32.gmra.mxu0 %v132
  %v583 = vpop.f32.mrf.mxu0
  %v584 = vadd.f32 0.0, %v583
  %585 = vmatmul.f32.gmra.mxu0 %v135
  %v586 = vpop.f32.mrf.mxu0
  %v587 = vadd.f32 0.0, %v586
  %588 = vmatmul.f32.gmra.mxu0 %v138
  %v589 = vpop.f32.mrf.mxu0
  %v590 = vadd.f32 0.0, %v589
  %591 = vmatmul.f32.gmra.mxu0 %v141
  %v592 = vpop.f32.mrf.mxu0
  %v593 = vadd.f32 0.0, %v592
  %594 = vmatmul.f32.gmra.mxu0 %v144
  %v595 = vpop.f32.mrf.mxu0
  %v596 = vadd.f32 0.0, %v595
  %597 = vmatmul.f32.gmra.mxu0 %v147
  %v598 = vpop.f32.mrf.mxu0
  %v599 = vadd.f32 0.0, %v598
  %600 = vmatmul.f32.gmra.mxu0 %v150
  %v601 = vpop.f32.mrf.mxu0
  %v602 = vadd.f32 0.0, %v601
  %603 = vmatmul.f32.gmra.mxu0 %v153
  %v604 = vpop.f32.mrf.mxu0
  %v605 = vadd.f32 0.0, %v604
  %606 = vmatmul.f32.gmra.mxu0 %v156
  %v607 = vpop.f32.mrf.mxu0
  %v608 = vadd.f32 0.0, %v607
  %609 = vmatmul.f32.gmra.mxu0 %v159
  %v610 = vpop.f32.mrf.mxu0
  %v611 = vadd.f32 0.0, %v610
  %612 = vmatmul.f32.gmra.mxu0 %v162
  %v613 = vpop.f32.mrf.mxu0
  %v614 = vadd.f32 0.0, %v613
  %615 = vmatmul.f32.gmra.mxu0 %v165
  %v616 = vpop.f32.mrf.mxu0
  %v617 = vadd.f32 0.0, %v616
  %618 = vmatmul.f32.gmra.mxu0 %v168
  %v619 = vpop.f32.mrf.mxu0
  %v620 = vadd.f32 0.0, %v619
  %621 = vmatmul.f32.gmra.mxu0 %v171
  %v622 = vpop.f32.mrf.mxu0
  %v623 = vadd.f32 0.0, %v622
  %624 = vmatmul.f32.gmra.mxu0 %v174
  %v625 = vpop.f32.mrf.mxu0
  %v626 = vadd.f32 0.0, %v625
  %627 = vmatmul.f32.gmra.mxu0 %v177
  %v628 = vpop.f32.mrf.mxu0
  %v629 = vadd.f32 0.0, %v628
  %630 = vmatmul.f32.gmra.mxu0 %v180
  %v631 = vpop.f32.mrf.mxu0
  %v632 = vadd.f32 0.0, %v631
  %633 = vdwg.mxu0
  %v634 = vmax.f32 %v200, %v224
  %v635 = vmax.f32 %v313, %v337
  %v636 = vmax.f32 %v426, %v450
  %v637 = vmax.f32 %v539, %v563
  %v638 = vmax.f32 %v203, %v227
  %v639 = vmax.f32 %v316, %v340
  %v640 = vmax.f32 %v429, %v453
  %v641 = vmax.f32 %v542, %v566
  %v642 = vmax.f32 %v206, %v230
  %v643 = vmax.f32 %v319, %v343
  %v644 = vmax.f32 %v432, %v456
  %v645 = vmax.f32 %v545, %v569
  %v646 = vmax.f32 %v209, %v233
  %v647 = vmax.f32 %v322, %v346
  %v648 = vmax.f32 %v435, %v459
  %v649 = vmax.f32 %v548, %v572
  %v650 = vmax.f32 %v212, %v236
  %v651 = vmax.f32 %v325, %v349
  %v652 = vmax.f32 %v438, %v462
  %v653 = vmax.f32 %v551, %v575
  %v654 = vmax.f32 %v215, %v239
  %v655 = vmax.f32 %v328, %v352
  %v656 = vmax.f32 %v441, %v465
  %v657 = vmax.f32 %v554, %v578
  %v658 = vmax.f32 %v218, %v242
  %v659 = vmax.f32 %v331, %v355
  %v660 = vmax.f32 %v444, %v468
  %v661 = vmax.f32 %v557, %v581
  %v662 = vmax.f32 %v221, %v245
  %v663 = vmax.f32 %v334, %v358
  %v664 = vmax.f32 %v447, %v471
  %v665 = vmax.f32 %v560, %v584
  %v666 = vmax.f32 %v248, %v272
  %v667 = vmax.f32 %v361, %v385
  %v668 = vmax.f32 %v474, %v498
  %v669 = vmax.f32 %v587, %v611
  %v670 = vmax.f32 %v251, %v275
  %v671 = vmax.f32 %v364, %v388
  %v672 = vmax.f32 %v477, %v501
  %v673 = vmax.f32 %v590, %v614
  %v674 = vmax.f32 %v254, %v278
  %v675 = vmax.f32 %v367, %v391
  %v676 = vmax.f32 %v480, %v504
  %v677 = vmax.f32 %v593, %v617
  %v678 = vmax.f32 %v257, %v281
  %v679 = vmax.f32 %v370, %v394
  %v680 = vmax.f32 %v483, %v507
  %v681 = vmax.f32 %v596, %v620
  %v682 = vmax.f32 %v260, %v284
  %v683 = vmax.f32 %v373, %v397
  %v684 = vmax.f32 %v486, %v510
  %v685 = vmax.f32 %v599, %v623
  %v686 = vmax.f32 %v263, %v287
  %v687 = vmax.f32 %v376, %v400
  %v688 = vmax.f32 %v489, %v513
  %v689 = vmax.f32 %v602, %v626
  %v690 = vmax.f32 %v266, %v290
  %v691 = vmax.f32 %v379, %v403
  %v692 = vmax.f32 %v492, %v516
  %v693 = vmax.f32 %v605, %v629
  %v694 = vmax.f32 %v269, %v293
  %v695 = vmax.f32 %v382, %v406
  %v696 = vmax.f32 %v495, %v519
  %v697 = vmax.f32 %v608, %v632
  %v698 = vmax.f32 %v634, %v666
  %v699 = vmax.f32 %v635, %v667
  %v700 = vmax.f32 %v636, %v668
  %v701 = vmax.f32 %v637, %v669
  %v702 = vmax.f32 %v638, %v670
  %v703 = vmax.f32 %v639, %v671
  %v704 = vmax.f32 %v640, %v672
  %v705 = vmax.f32 %v641, %v673
  %v706 = vmax.f32 %v642, %v674
  %v707 = vmax.f32 %v643, %v675
  %v708 = vmax.f32 %v644, %v676
  %v709 = vmax.f32 %v645, %v677
  %v710 = vmax.f32 %v646, %v678
  %v711 = vmax.f32 %v647, %v679
  %v712 = vmax.f32 %v648, %v680
  %v713 = vmax.f32 %v649, %v681
  %v714 = vmax.f32 %v650, %v682
  %v715 = vmax.f32 %v651, %v683
  %v716 = vmax.f32 %v652, %v684
  %v717 = vmax.f32 %v653, %v685
  %v718 = vmax.f32 %v654, %v686
  %v719 = vmax.f32 %v655, %v687
  %v720 = vmax.f32 %v656, %v688
  %v721 = vmax.f32 %v657, %v689
  %v722 = vmax.f32 %v658, %v690
  %v723 = vmax.f32 %v659, %v691
  %v724 = vmax.f32 %v660, %v692
  %v725 = vmax.f32 %v661, %v693
  %v726 = vmax.f32 %v662, %v694
  %v727 = vmax.f32 %v663, %v695
  %v728 = vmax.f32 %v664, %v696
  %v729 = vmax.f32 %v665, %v697
  %v730 = vld [vmem:[%s2] sm:$0xff]
  %v731 = vld [vmem:[%s2 + $0x8] sm:$0x3]
  %v732 = vld [vmem:[%s3] sm:$0xff]
  %v733 = vld [vmem:[%s3 + $0x8] sm:$0xff]
  %v734 = vld [vmem:[%s3 + $0x10] sm:$0xff]
  %v735 = vld [vmem:[%s3 + $0x18] sm:$0xff]
  %v736 = vld [vmem:[%s3 + $0x20] sm:$0x3]
  %v737 = vld [vmem:[%s3 + $0x28] sm:$0x3]
  %v738 = vld [vmem:[%s3 + $0x30] sm:$0x3]
  %v739 = vld [vmem:[%s3 + $0x38] sm:$0x3]
  %vm740 = vcmask 523264
  %v742 = vsel %vm740, %v730, 0
  %v745 = vsel %vm740, %v731, 0
  %747 = vmatpush.msra.mxu0 0.0
  %748 = vmatpush.msra.mxu0 0.0
  %749 = vmatpush.msra.mxu0 0.0
  %750 = vmatpush.msra.mxu0 0.0
  %751 = vmatpush.msra.mxu0 0.0
  %752 = vmatpush.msra.mxu0 0.0
  %753 = vmatpush.msra.mxu0 0.0
  %754 = vmatpush.msra.mxu0 0.0
  %755 = vmatpush.msra.mxu0 %v726
  %756 = vmatpush.msra.mxu0 %v722
  %757 = vmatpush.msra.mxu0 %v718
  %758 = vmatpush.msra.mxu0 %v714
  %759 = vmatpush.msra.mxu0 %v710
  %760 = vmatpush.msra.mxu0 %v706
  %761 = vmatpush.msra.mxu0 %v702
  %762 = vmatpush.msra.mxu0 %v698
  %763 = vmatmul.f32.gmra.mxu0 %v742
  %v764 = vpop.f32.mrf.mxu0
  %v765 = vadd.f32 %v732, %v764
  %766 = vmatmul.f32.gmra.mxu0 %v745
  %v767 = vpop.f32.mrf.mxu0
  %v768 = vadd.f32 %v736, %v767
  %769 = vdwg.mxu0
  %770 = vmatpush.msra.mxu0 0.0
  %771 = vmatpush.msra.mxu0 0.0
  %772 = vmatpush.msra.mxu0 0.0
  %773 = vmatpush.msra.mxu0 0.0
  %774 = vmatpush.msra.mxu0 0.0
  %775 = vmatpush.msra.mxu0 0.0
  %776 = vmatpush.msra.mxu0 0.0
  %777 = vmatpush.msra.mxu0 0.0
  %778 = vmatpush.msra.mxu0 %v727
  %779 = vmatpush.msra.mxu0 %v723
  %780 = vmatpush.msra.mxu0 %v719
  %781 = vmatpush.msra.mxu0 %v715
  %782 = vmatpush.msra.mxu0 %v711
  %783 = vmatpush.msra.mxu0 %v707
  %784 = vmatpush.msra.mxu0 %v703
  %785 = vmatpush.msra.mxu0 %v699
  %786 = vmatmul.f32.gmra.mxu0 %v742
  %v787 = vpop.f32.mrf.mxu0
  %v788 = vadd.f32 %v733, %v787
  %789 = vmatmul.f32.gmra.mxu0 %v745
  %v790 = vpop.f32.mrf.mxu0
  %v791 = vadd.f32 %v737, %v790
  %792 = vdwg.mxu0
  %793 = vmatpush.msra.mxu0 0.0
  %794 = vmatpush.msra.mxu0 0.0
  %795 = vmatpush.msra.mxu0 0.0
  %796 = vmatpush.msra.mxu0 0.0
  %797 = vmatpush.msra.mxu0 0.0
  %798 = vmatpush.msra.mxu0 0.0
  %799 = vmatpush.msra.mxu0 0.0
  %800 = vmatpush.msra.mxu0 0.0
  %801 = vmatpush.msra.mxu0 %v728
  %802 = vmatpush.msra.mxu0 %v724
  %803 = vmatpush.msra.mxu0 %v720
  %804 = vmatpush.msra.mxu0 %v716
  %805 = vmatpush.msra.mxu0 %v712
  %806 = vmatpush.msra.mxu0 %v708
  %807 = vmatpush.msra.mxu0 %v704
  %808 = vmatpush.msra.mxu0 %v700
  %809 = vmatmul.f32.gmra.mxu0 %v742
  %v810 = vpop.f32.mrf.mxu0
  %v811 = vadd.f32 %v734, %v810
  %812 = vmatmul.f32.gmra.mxu0 %v745
  %v813 = vpop.f32.mrf.mxu0
  %v814 = vadd.f32 %v738, %v813
  %815 = vdwg.mxu0
  %816 = vmatpush.msra.mxu0 0.0
  %817 = vmatpush.msra.mxu0 0.0
  %818 = vmatpush.msra.mxu0 0.0
  %819 = vmatpush.msra.mxu0 0.0
  %820 = vmatpush.msra.mxu0 0.0
  %821 = vmatpush.msra.mxu0 0.0
  %822 = vmatpush.msra.mxu0 0.0
  %823 = vmatpush.msra.mxu0 0.0
  %824 = vmatpush.msra.mxu0 %v729
  %825 = vmatpush.msra.mxu0 %v725
  %826 = vmatpush.msra.mxu0 %v721
  %827 = vmatpush.msra.mxu0 %v717
  %828 = vmatpush.msra.mxu0 %v713
  %829 = vmatpush.msra.mxu0 %v709
  %830 = vmatpush.msra.mxu0 %v705
  %831 = vmatpush.msra.mxu0 %v701
  %832 = vmatmul.f32.gmra.mxu0 %v742
  %v833 = vpop.f32.mrf.mxu0
  %v834 = vadd.f32 %v735, %v833
  %835 = vmatmul.f32.gmra.mxu0 %v745
  %v836 = vpop.f32.mrf.mxu0
  %v837 = vadd.f32 %v739, %v836
  %838 = vdwg.mxu0
  %vm839 = vcmask 1041408
  %v840 = vsel %vm839, %v768, -inf
  %v841 = vmax.f32 %v765, %v840
  %v842 = vrot.slane %v841, 4
  %v843 = vmax.f32 %v841, %v842
  %v844 = vrot.slane %v843, 2
  %v845 = vmax.f32 %v843, %v844
  %v846 = vrot.slane %v845, 1
  %v847 = vmax.f32 %v845, %v846
  %v848 = vsel %vm839, %v791, -inf
  %v849 = vmax.f32 %v788, %v848
  %v850 = vrot.slane %v849, 4
  %v851 = vmax.f32 %v849, %v850
  %v852 = vrot.slane %v851, 2
  %v853 = vmax.f32 %v851, %v852
  %v854 = vrot.slane %v853, 1
  %v855 = vmax.f32 %v853, %v854
  %v856 = vsel %vm839, %v814, -inf
  %v857 = vmax.f32 %v811, %v856
  %v858 = vrot.slane %v857, 4
  %v859 = vmax.f32 %v857, %v858
  %v860 = vrot.slane %v859, 2
  %v861 = vmax.f32 %v859, %v860
  %v862 = vrot.slane %v861, 1
  %v863 = vmax.f32 %v861, %v862
  %v864 = vsel %vm839, %v837, -inf
  %v865 = vmax.f32 %v834, %v864
  %v866 = vrot.slane %v865, 4
  %v867 = vmax.f32 %v865, %v866
  %v868 = vrot.slane %v867, 2
  %v869 = vmax.f32 %v867, %v868
  %v870 = vrot.slane %v869, 1
  %v871 = vmax.f32 %v869, %v870
  %v872 = vsub.f32 %v765, %v847
  %v873 = vsub.f32 %v788, %v855
  %v874 = vsub.f32 %v811, %v863
  %v875 = vsub.f32 %v834, %v871
  %v876 = vsub.f32 %v768, %v847
  %v877 = vsub.f32 %v791, %v855
  %v878 = vsub.f32 %v814, %v863
  %v879 = vsub.f32 %v837, %v871
  %v880 = vmul.f32 %v872, 1.442695
  %v881 = vpow.pop %v880
  %v882 = vmul.f32 %v873, 1.442695
  %v883 = vpow.pop %v882
  %v884 = vmul.f32 %v874, 1.442695
  %v885 = vpow.pop %v884
  %v886 = vmul.f32 %v875, 1.442695
  %v887 = vpow.pop %v886
  %v888 = vmul.f32 %v876, 1.442695
  %v889 = vpow.pop %v888
  %v890 = vmul.f32 %v877, 1.442695
  %v891 = vpow.pop %v890
  %v892 = vmul.f32 %v878, 1.442695
  %v893 = vpow.pop %v892
  %v894 = vmul.f32 %v879, 1.442695
  %v895 = vpow.pop %v894
  %v896 = vsel %vm839, %v889, 0.0
  %v897 = vadd.f32 %v881, %v896
  %v898 = vrot.slane %v897, 4
  %v899 = vadd.f32 %v897, %v898
  %v900 = vrot.slane %v899, 2
  %v901 = vadd.f32 %v899, %v900
  %v902 = vrot.slane %v901, 1
  %v903 = vadd.f32 %v901, %v902
  %v904 = vsel %vm839, %v891, 0.0
  %v905 = vadd.f32 %v883, %v904
  %v906 = vrot.slane %v905, 4
  %v907 = vadd.f32 %v905, %v906
  %v908 = vrot.slane %v907, 2
  %v909 = vadd.f32 %v907, %v908
  %v910 = vrot.slane %v909, 1
  %v911 = vadd.f32 %v909, %v910
  %v912 = vsel %vm839, %v893, 0.0
  %v913 = vadd.f32 %v885, %v912
  %v914 = vrot.slane %v913, 4
  %v915 = vadd.f32 %v913, %v914
  %v916 = vrot.slane %v915, 2
  %v917 = vadd.f32 %v915, %v916
  %v918 = vrot.slane %v917, 1
  %v919 = vadd.f32 %v917, %v918
  %v920 = vsel %vm839, %v895, 0.0
  %v921 = vadd.f32 %v887, %v920
  %v922 = vrot.slane %v921, 4
  %v923 = vadd.f32 %v921, %v922
  %v924 = vrot.slane %v923, 2
  %v925 = vadd.f32 %v923, %v924
  %v926 = vrot.slane %v925, 1
  %v927 = vadd.f32 %v925, %v926
  %v928 = vrcp.pop %v903
  %v929 = vmul.f32 %v903, %v928
  %v930 = vsub.f32 1.0, %v929
  %v931 = vmul.f32 %v928, %v930
  %v932 = vadd.f32 %v928, %v931
  %vm933 = vweird.f32 %v903
  %vm934 = vweird.f32 %v928
  %vm935 = vmor %vm933, %vm934
  %v936 = vsel %vm935, %v928, %v932
  %v937 = vand.u32 2147483647, %v903
  %vm938 = vcmp.eq.f32.partialorder %v937, 8.507059e+37
  %v939 = vand.u32 %v903, 2147483648
  %v940 = vor.u32 1.1754944e-38, %v939
  %v941 = vsel %vm938, %v940, %v936
  %v942 = vmul.f32 %v881, %v941
  %v943 = vrcp.pop %v911
  %v944 = vmul.f32 %v911, %v943
  %v945 = vsub.f32 1.0, %v944
  %v946 = vmul.f32 %v943, %v945
  %v947 = vadd.f32 %v943, %v946
  %vm948 = vweird.f32 %v911
  %vm949 = vweird.f32 %v943
  %vm950 = vmor %vm948, %vm949
  %v951 = vsel %vm950, %v943, %v947
  %v952 = vand.u32 2147483647, %v911
  %vm953 = vcmp.eq.f32.partialorder %v952, 8.507059e+37
  %v954 = vand.u32 %v911, 2147483648
  %v955 = vor.u32 1.1754944e-38, %v954
  %v956 = vsel %vm953, %v955, %v951
  %v957 = vmul.f32 %v883, %v956
  %v958 = vrcp.pop %v919
  %v959 = vmul.f32 %v919, %v958
  %v960 = vsub.f32 1.0, %v959
  %v961 = vmul.f32 %v958, %v960
  %v962 = vadd.f32 %v958, %v961
  %vm963 = vweird.f32 %v919
  %vm964 = vweird.f32 %v958
  %vm965 = vmor %vm963, %vm964
  %v966 = vsel %vm965, %v958, %v962
  %v967 = vand.u32 2147483647, %v919
  %vm968 = vcmp.eq.f32.partialorder %v967, 8.507059e+37
  %v969 = vand.u32 %v919, 2147483648
  %v970 = vor.u32 1.1754944e-38, %v969
  %v971 = vsel %vm968, %v970, %v966
  %v972 = vmul.f32 %v885, %v971
  %v973 = vrcp.pop %v927
  %v974 = vmul.f32 %v927, %v973
  %v975 = vsub.f32 1.0, %v974
  %v976 = vmul.f32 %v973, %v975
  %v977 = vadd.f32 %v973, %v976
  %vm978 = vweird.f32 %v927
  %vm979 = vweird.f32 %v973
  %vm980 = vmor %vm978, %vm979
  %v981 = vsel %vm980, %v973, %v977
  %v982 = vand.u32 2147483647, %v927
  %vm983 = vcmp.eq.f32.partialorder %v982, 8.507059e+37
  %v984 = vand.u32 %v927, 2147483648
  %v985 = vor.u32 1.1754944e-38, %v984
  %v986 = vsel %vm983, %v985, %v981
  %v987 = vmul.f32 %v887, %v986
  %v988 = vmul.f32 %v889, %v941
  %v989 = vmul.f32 %v891, %v956
  %v990 = vmul.f32 %v893, %v971
  %v991 = vmul.f32 %v895, %v986
  %992 = vst [vmem:[%s4] sm:$0xff] %v942
  %993 = vst [vmem:[%s4 + $0x8] sm:$0xff] %v957
  %994 = vst [vmem:[%s4 + $0x10] sm:$0xff] %v972
  %995 = vst [vmem:[%s4 + $0x18] sm:$0xff] %v987
  %996 = vst [vmem:[%s4 + $0x20] sm:$0x3] %v988
  %997 = vst [vmem:[%s4 + $0x28] sm:$0x3] %v989
  %998 = vst [vmem:[%s4 + $0x30] sm:$0x3] %v990
  %999 = vst [vmem:[%s4 + $0x38] sm:$0x3] %v991
  // Predicated region
  $region18: #{simple_cnn_forward.1} parent=0 // pred_check
    _
  $region19: #{simple_cnn_forward.1} parent=0 // pred_check_branch
    %1001 = sbr.rel (0) target = $region21
  $region20: #{simple_cnn_forward.1} parent=0 // pred_region
    _
  $region21: #{simple_cnn_forward.1} parent=0 // pred_fallthru
    _
  // Predicated region
  $region22: #{simple_cnn_forward.1} parent=0 // pred_check
    _
  $region23: #{simple_cnn_forward.1} parent=0 // pred_check_branch
    %1003 = sbr.rel (0) target = $region25
  $region24: #{simple_cnn_forward.1} parent=0 // pred_region
    _
  $region25: #{simple_cnn_forward.1} parent=0 // pred_fallthru
    _

</llo_original>
